<compile_context>
chip_gen: v6e
topology: v6e:2x2x1
jax: 0.10.0
libtpu: 0.0.40
codegen_flags: <defaults>
</compile_context>

<pallas_src>
import functools

import jax
import jax.numpy as jnp
from jax import lax
from jax.experimental import pallas as pl
from jax.experimental.pallas import tpu as pltpu

LANES = 128
SUBLANES = 8
MAX_TILE_ROWS = 1024  # 1024 x 128 x 4 B = 512 KiB per f32 input block


def _wmse_kernel(o_ref, t_ref, out_ref, *, tile_rows, valid_rows, needs_mask):
    c = pl.program_id(0)   # core-split axis ("parallel")
    i = pl.program_id(1)   # sequential streaming axis ("arbitrary")

    # Zero the resident output-block accumulator at the start of each split's stream.
    @pl.when(i == 0)
    def _():
        out_ref[...] = jnp.zeros_like(out_ref)

    # Cast to f32 in-kernel (keeps HBM traffic at the input dtype width).
    a = o_ref[...].astype(jnp.float32)
    b = t_ref[...].astype(jnp.float32)
    d = (a - b) * (a - b) * jnp.exp(b)  # weighted squared error (VPU + EUP)

    if needs_mask:
        # Mask rows beyond the real array: last-tile overhang, or a phantom
        # (clamped) block produced by an uneven 2-way core split.
        block_idx = c * pl.num_programs(1) + i
        row0 = block_idx * tile_rows
        row_ids = row0 + lax.broadcasted_iota(jnp.int32, (tile_rows, 1), 0)
        d = jnp.where(row_ids < valid_rows, d, 0.0)

    out_ref[...] += d[None]  # element-wise accumulate into the resident block


def wmse_loss(output: jax.Array, target: jax.Array) -> jax.Array:
    assert output.shape == target.shape, "output/target must have the same shape"
    n_true = output.size

    o_flat = output.reshape(-1)
    t_flat = target.reshape(-1)

    # Lane-dense 2D slab. Common NCHW case (size % 128 == 0) is a free reshape;
    # otherwise pad minimally with zeros ((0-0)^2 * exp(0) == 0 contributes nothing).
    pad = (-n_true) % LANES
    if pad:
        o_flat = jnp.pad(o_flat, (0, pad))
        t_flat = jnp.pad(t_flat, (0, pad))
    rows = o_flat.size // LANES
    o2d = o_flat.reshape(rows, LANES)
    t2d = t_flat.reshape(rows, LANES)

    # Big streaming tile; clamp to the (8-row aligned) array size for small inputs.
    tile_rows = min(MAX_TILE_ROWS, ((rows + SUBLANES - 1) // SUBLANES) * SUBLANES)
    n_tiles = -(-rows // tile_rows)

    # v7x: split the row range across the 2 TensorCores; no-op on 1-TC chips.
    num_splits = 2 if n_tiles >= 2 else 1
    tiles_per_split = -(-n_tiles // num_splits)
    needs_mask = (rows % tile_rows != 0) or (num_splits * tiles_per_split != n_tiles)

    def in_index_map(c, i):
        b = c * tiles_per_split + i
        # Clamp phantom blocks from an uneven split to a valid block index;
        # the kernel's row mask zeroes their contribution.
        return (jnp.minimum(b, n_tiles - 1), 0)

    kernel = functools.partial(
        _wmse_kernel, tile_rows=tile_rows, valid_rows=rows, needs_mask=needs_mask
    )

    partials = pl.pallas_call(
        kernel,
        out_shape=jax.ShapeDtypeStruct((num_splits, tile_rows, LANES), jnp.float32),
        grid_spec=pltpu.PrefetchScalarGridSpec(
            num_scalar_prefetch=0,
            grid=(num_splits, tiles_per_split),
            in_specs=[
                pl.BlockSpec((tile_rows, LANES), in_index_map),
                pl.BlockSpec((tile_rows, LANES), in_index_map),
            ],
            out_specs=pl.BlockSpec((1, tile_rows, LANES), lambda c, i: (c, 0, 0)),
        ),
        compiler_params=pltpu.CompilerParams(
            dimension_semantics=("parallel", "arbitrary"),
        ),
    )(o2d, t2d)

    # Tiny XLA epilogue: one cross-lane reduce + mean over the TRUE element count.
    return jnp.sum(partials) * (1.0 / float(n_true))


def wmse_loss_ref(output, target):
    d = (output - target) ** 2 * jnp.exp(target)
    return jnp.mean(d)


if __name__ == "__main__":
    key = jax.random.PRNGKey(0)
    k1, k2 = jax.random.split(key)
    # Small NCHW shapes consistent with the module's expected inputs.
    shape = (2, 4, 16, 16)
    output = jax.random.normal(k1, shape, dtype=jnp.float32)
    target = jax.random.normal(k2, shape, dtype=jnp.float32)

    loss = jax.block_until_ready(wmse_loss(output, target))
    ref = jax.block_until_ready(wmse_loss_ref(output, target))

    assert jnp.allclose(loss, ref, rtol=1e-5, atol=1e-6), (loss, ref)
    print("KERNEL_OK")
</pallas_src>

<mosaic_0001>
module attributes {stable_mosaic.version = 11 : i64} {
  func.func @_wmse_kernel(%arg0: i32, %arg1: i32, %arg2: memref<16x128xf32, #tpu.memory_space<vmem>>, %arg3: memref<16x128xf32, #tpu.memory_space<vmem>>, %arg4: memref<1x16x128xf32, #tpu.memory_space<vmem>>) attributes {dimension_semantics = [#tpu.dimension_semantics<parallel>, #tpu.dimension_semantics<arbitrary>], iteration_bounds = array<i64: 1, 1>, scalar_prefetch = 0 : i64, scratch_operands = 0 : i64, tpu.core_type = #tpu.core_type<tc>, window_params = [{transform_indices = @transform_0, window_bounds = array<i64: 16, 128>}, {transform_indices = @transform_1, window_bounds = array<i64: 16, 128>}, {transform_indices = @transform_2, window_bounds = array<i64: 1, 16, 128>}]} {
    %c0_i32 = arith.constant 0 : i32
    %0 = arith.cmpi eq, %arg1, %c0_i32 : i32
    %1 = arith.extui %0 : i1 to i32
    %c0_i32_0 = arith.constant 0 : i32
    %2 = arith.cmpi ne, %1, %c0_i32_0 : i32
    scf.if %2 {
      %cst = arith.constant 0.000000e+00 : f32
      %14 = vector.broadcast %cst : f32 to vector<1x16x128xf32>
      %c0_10 = arith.constant 0 : index
      %c0_11 = arith.constant 0 : index
      %c0_12 = arith.constant 0 : index
      %15 = vector.load %arg4[%c0_10, %c0_11, %c0_12] : memref<1x16x128xf32, #tpu.memory_space<vmem>>, vector<1x16x128xf32>
      tpu.vector_store %arg4[%c0_10, %c0_11, %c0_12], %14 {strides = array<i32>} : memref<1x16x128xf32, #tpu.memory_space<vmem>>, vector<1x16x128xf32>,
    } else {
    }
    %c0 = arith.constant 0 : index
    %c0_1 = arith.constant 0 : index
    %3 = vector.load %arg2[%c0, %c0_1] : memref<16x128xf32, #tpu.memory_space<vmem>>, vector<16x128xf32>
    %c0_2 = arith.constant 0 : index
    %c0_3 = arith.constant 0 : index
    %4 = vector.load %arg3[%c0_2, %c0_3] : memref<16x128xf32, #tpu.memory_space<vmem>>, vector<16x128xf32>
    %5 = arith.subf %3, %4 : vector<16x128xf32>
    %6 = arith.subf %3, %4 : vector<16x128xf32>
    %7 = arith.mulf %5, %6 : vector<16x128xf32>
    %8 = math.exp %4 : vector<16x128xf32>
    %9 = arith.mulf %7, %8 : vector<16x128xf32>
    %c0_4 = arith.constant 0 : index
    %c0_5 = arith.constant 0 : index
    %c0_6 = arith.constant 0 : index
    %10 = vector.load %arg4[%c0_4, %c0_5, %c0_6] : memref<1x16x128xf32, #tpu.memory_space<vmem>>, vector<1x16x128xf32>
    %11 = vector.shape_cast %9 : vector<16x128xf32> to vector<1x16x128xf32>
    %12 = arith.addf %10, %11 : vector<1x16x128xf32>
    %c0_7 = arith.constant 0 : index
    %c0_8 = arith.constant 0 : index
    %c0_9 = arith.constant 0 : index
    %13 = vector.load %arg4[%c0_7, %c0_8, %c0_9] : memref<1x16x128xf32, #tpu.memory_space<vmem>>, vector<1x16x128xf32>
    tpu.vector_store %arg4[%c0_7, %c0_8, %c0_9], %12 {strides = array<i32>} : memref<1x16x128xf32, #tpu.memory_space<vmem>>, vector<1x16x128xf32>,
    return
  }
  func.func @transform_0(%arg0: i32, %arg1: i32) -> (i32, i32) {
    %c1_i32 = arith.constant 1 : i32
    %0 = arith.muli %arg0, %c1_i32 : i32
    %1 = arith.addi %0, %arg1 : i32
    %c0_i32 = arith.constant 0 : i32
    %2 = arith.minsi %1, %c0_i32 : i32
    %c0_i32_0 = arith.constant 0 : i32
    %c0_i32_1 = arith.constant 0 : i32
    return %2, %c0_i32_0 : i32, i32
  }
  func.func @transform_1(%arg0: i32, %arg1: i32) -> (i32, i32) {
    %c1_i32 = arith.constant 1 : i32
    %0 = arith.muli %arg0, %c1_i32 : i32
    %1 = arith.addi %0, %arg1 : i32
    %c0_i32 = arith.constant 0 : i32
    %2 = arith.minsi %1, %c0_i32 : i32
    %c0_i32_0 = arith.constant 0 : i32
    %c0_i32_1 = arith.constant 0 : i32
    return %2, %c0_i32_0 : i32, i32
  }
  func.func @transform_2(%arg0: i32, %arg1: i32) -> (i32, i32, i32) {
    %c0_i32 = arith.constant 0 : i32
    %c0_i32_0 = arith.constant 0 : i32
    %c0_i32_1 = arith.constant 0 : i32
    return %arg0, %c0_i32, %c0_i32_0 : i32, i32, i32
  }
}

</mosaic_0001>

<llo_original>
// kernel: tpu_custom_call.1
$region0: #{tpu_custom_call.1}
  #allocation0 [shape = 'u32[]', space=smem, size = 0x4, offset = 0x4, fixed_abs, tag = 'smem constant byte address 0x4 - core index']
  #allocation1 [shape = 'u32[144,128]{1,0:T(1,128)}', space=vmem, size = 0x12000, scoped, tag = 'internal scratch']
  %s0 = inlined_call_operand.hbm [shape: f32[16,128], index: 0, kind: input, shape index: {}]
  %s1 = inlined_call_operand.hbm [shape: f32[16,128], index: 1, kind: input, shape index: {}]
  %s2 = inlined_call_operand.hbm [shape: f32[1,16,128], index: 2, kind: output, shape index: {}]
  %s3 = sld [smem:[#allocation0]]
  $region30: #{tpu_custom_call.1} parent=0
    _
  %s5 = ssub.s32 1, %s3
  %s6 = scalar_select 0, %s5, %s3
  $region1: #{tpu_custom_call.1} parent=0
    #allocation2 [shape = 'u8[8192]{0}', space=vmem, size = 0x2000, scoped, tag = 'input window, operand 0, single buffered']
    #allocation3 [shape = 's32[1]{0}', space=sflag, size = 0x4, scoped, tag = 'scoped memory for tpu_custom_call.1']
    #allocation4 [shape = 's32[1]{0}', space=sflag, size = 0x4, scoped, tag = 'scoped memory for tpu_custom_call.1']
    #allocation5 [shape = 'u8[8192]{0}', space=vmem, size = 0x2000, scoped, tag = 'input window, operand 1, single buffered']
    #allocation6 [shape = 's32[1]{0}', space=sflag, size = 0x4, scoped, tag = 'scoped memory for tpu_custom_call.1']
    #allocation7 [shape = 'u8[8192]{0}', space=vmem, size = 0x2000, scoped, tag = 'output window, operand 0, single buffered']
    %7 = vsyncpa [#allocation3], 0
    %8 = vsyncpa [#allocation6], 0
    %9 = vsyncpa [#allocation4], 0
    // Predicated region
    $region2: #{tpu_custom_call.1} parent=1 // pred_check
      _
    $region3: #{tpu_custom_call.1} parent=1 // pred_check_branch
      %11 = sbr.rel (0) target = $region5
    $region4: #{tpu_custom_call.1} parent=1 // pred_region
      %s12 = sadd.s32 0, 0
      %p13 = scmp.lt.s32.totalorder %s12, 0
      %s14 = scalar_select %p13, %s12, 0
      %s15 = smul.u32 2, %s14
      %s17 = ssub.s32 256, 256
      %18 = vsyncadd [#allocation3], %s17
      %s19 = smul.addr %s15, 128
      %s20 = scalar_lea.hbm %s0, %s19
      %s21 = sshll.u32 [#allocation2], 4
      %s22 = int_to_ptr.vmem [resolvable:$true] %s21
      %27 = dma.hbm_to_vmem [thread:$0]  %s20, 256, %s22, [#allocation3], 128, 128, 8
    $region5: #{tpu_custom_call.1} parent=1 // pred_fallthru
      _
    // Predicated region
    $region6: #{tpu_custom_call.1} parent=1 // pred_check
      _
    $region7: #{tpu_custom_call.1} parent=1 // pred_check_branch
      %29 = sbr.rel (0) target = $region9
    $region8: #{tpu_custom_call.1} parent=1 // pred_region
      %s30 = sadd.s32 0, 0
      %p31 = scmp.lt.s32.totalorder %s30, 0
      %s32 = scalar_select %p31, %s30, 0
      %s33 = smul.u32 2, %s32
      %s35 = ssub.s32 256, 256
      %36 = vsyncadd [#allocation6], %s35
      %s37 = smul.addr %s33, 128
      %s38 = scalar_lea.hbm %s1, %s37
      %s39 = sshll.u32 [#allocation5], 4
      %s40 = int_to_ptr.vmem [resolvable:$true] %s39
      %45 = dma.hbm_to_vmem [thread:$0]  %s38, 256, %s40, [#allocation6], 128, 128, 8
    $region9: #{tpu_custom_call.1} parent=1 // pred_fallthru
      _
    // Predicated region
    $region10: #{tpu_custom_call.1} parent=1 // pred_check
      _
    $region11: #{tpu_custom_call.1} parent=1 // pred_check_branch
      %47 = sbr.rel (0) target = $region13
    $region12: #{tpu_custom_call.1} parent=1 // pred_region
      %48 = dma.done [#allocation3], 256
    $region13: #{tpu_custom_call.1} parent=1 // pred_fallthru
      _
    // Predicated region
    $region14: #{tpu_custom_call.1} parent=1 // pred_check
      _
    $region15: #{tpu_custom_call.1} parent=1 // pred_check_branch
      %50 = sbr.rel (0) target = $region17
    $region16: #{tpu_custom_call.1} parent=1 // pred_region
      %51 = dma.done [#allocation6], 256
    $region17: #{tpu_custom_call.1} parent=1 // pred_fallthru
      _
    %s52 = sadd.s32 0, 0
    %p53 = scmp.lt.s32.totalorder %s52, 0
    %s54 = scalar_select %p53, %s52, 0
    %s55 = smul.u32 2, %s54
    %s56 = sadd.s32 0, 0
    %p57 = scmp.lt.s32.totalorder %s56, 0
    %s58 = scalar_select %p57, %s56, 0
    %s59 = smul.u32 2, %s58
    %p60 = scmp.eq.s32.totalorder 0, 0
    // Predicated region
    $region18: #{tpu_custom_call.1} parent=1 // pred_check
      %p61 = pneg %p60
    $region19: #{tpu_custom_call.1} parent=1 // pred_check_branch
      %63 = sbr.rel (%p61) target = $region21
    $region20: #{tpu_custom_call.1} parent=1 // pred_region
      %64 = vst [vmem:[#allocation7] sm:$0xff] 0.0
      %65 = vst [vmem:[#allocation7 + $0x8] sm:$0xff] 0.0
    $region21: #{tpu_custom_call.1} parent=1 // pred_fallthru
      _
    %v66 = vld [vmem:[#allocation2] sm:$0xff]
    %v67 = vld [vmem:[#allocation2 + $0x8] sm:$0xff]
    %v68 = vld [vmem:[#allocation5] sm:$0xff]
    %v69 = vld [vmem:[#allocation5 + $0x8] sm:$0xff]
    %v70 = vsub.f32 %v66, %v68
    %v71 = vsub.f32 %v67, %v69
    %v72 = vmul.f32 %v70, %v70
    %v73 = vmul.f32 %v71, %v71
    %v74 = vmul.f32 %v68, 1.442695
    %v75 = vpow.pop %v74
    %v76 = vmul.f32 %v69, 1.442695
    %v77 = vpow.pop %v76
    %v78 = vmul.f32 %v72, %v75
    %v79 = vmul.f32 %v73, %v77
    %v80 = vld [vmem:[#allocation7] sm:$0xff]
    %v81 = vld [vmem:[#allocation7 + $0x8] sm:$0xff]
    %v82 = vadd.f32 %v80, %v78
    %v83 = vadd.f32 %v81, %v79
    %84 = vst [vmem:[#allocation7] sm:$0xff] %v82
    %85 = vst [vmem:[#allocation7 + $0x8] sm:$0xff] %v83
    // Predicated region
    $region22: #{tpu_custom_call.1} parent=1 // pred_check
      _
    $region23: #{tpu_custom_call.1} parent=1 // pred_check_branch
      %87 = sbr.rel (0) target = $region25
    $region24: #{tpu_custom_call.1} parent=1 // pred_region
      %s89 = ssub.s32 256, 256
      %90 = vsyncadd [#allocation4], %s89
      %s91 = sshll.u32 [#allocation7], 4
      %s92 = int_to_ptr.vmem [resolvable:$true] %s91
      %97 = dma.vmem_to_hbm [thread:$0]  %s92, 256, %s2, [#allocation4], 128, 128, 8
    $region25: #{tpu_custom_call.1} parent=1 // pred_fallthru
      _
    // Predicated region
    $region26: #{tpu_custom_call.1} parent=1 // pred_check
      _
    $region27: #{tpu_custom_call.1} parent=1 // pred_check_branch
      %99 = sbr.rel (0) target = $region29
    $region28: #{tpu_custom_call.1} parent=1 // pred_region
      %100 = dma.done [#allocation4], 256
    $region29: #{tpu_custom_call.1} parent=1 // pred_fallthru
      _
    %101 = vsyncpa [#allocation3], 1
    %102 = vsyncpa [#allocation6], 1
    %103 = vsyncpa [#allocation4], 1

</llo_original>
